<compile_context>
chip_gen: v6e
topology: v6e:2x2x1
jax: 0.10.0
libtpu: 0.0.40
codegen_flags: <defaults>
</compile_context>

<pallas_src>
import functools

import jax
import jax.numpy as jnp
from jax.experimental import pallas as pl
from jax.experimental.pallas import tpu as pltpu


# ----------------------------- fused kernel --------------------------------

def _fused_vgcn_kernel(adj_t_ref, feat_ref, mask_col_ref, mask_row_ref, *rest,
                       num_layers, mxu_dtype):
    out_ref = rest[-1]
    wb_refs = rest[:-1]          # (w_agg_0, w_jump_0, b_0, w_agg_1, ...)

    adj_t = adj_t_ref[...].astype(jnp.float32)     # (N, N); 0/1, exact in bf16
    mask_col = mask_col_ref[...]                   # (N, 1) f32
    mask_row = mask_row_ref[...]                   # (1, N) f32

    # ---- hoisted normalization (depends only on graph + mask, not on feat) ----
    # masked in-degree: deg[v] = sum_{u: u->v} mask[u]   (VPU mul + lane reduce,
    # avoids a lane-width-1 MXU matmul)
    masked_deg = jnp.sum(adj_t * mask_row, axis=1, keepdims=True)        # (N, 1)
    norm = jnp.where(masked_deg == 0.0, 1.0, jax.lax.rsqrt(masked_deg))  # (N, 1)
    mn = mask_col * norm                      # per-source scale folded into feat
    # row-normalized adjacency, computed once and cast once for the MXU
    a_scaled = (norm * adj_t).astype(mxu_dtype)                          # (N, N)

    h = feat_ref[...]                                                    # (N, F) f32
    for layer in range(num_layers):
        w_agg = wb_refs[3 * layer][...]        # (F_l, O_l)  mxu_dtype
        w_jump = wb_refs[3 * layer + 1][...]   # (F_l, O_l)  mxu_dtype
        b = wb_refs[3 * layer + 2][...]        # (1,   O_l)  f32

        f = (mn * h).astype(mxu_dtype)         # mask * norm * feat (source side)
        # agg[v] = norm[v] * sum_u adj_t[v,u] * mask[u] * norm[u] * h[u]
        agg = jnp.dot(a_scaled, f, preferred_element_type=jnp.float32)   # (N, F_l)

        # rst = cat([agg, h], -1) @ W + b  ==  agg @ w_agg + h @ w_jump + b
        out = (jnp.dot(agg.astype(mxu_dtype), w_agg,
                       preferred_element_type=jnp.float32)
               + jnp.dot(h.astype(mxu_dtype), w_jump,
                         preferred_element_type=jnp.float32)
               + b)
        if layer < num_layers - 1:             # last layer: activation=None
            out = jnp.maximum(out, 0.0)
        h = out

    out_ref[...] = h.astype(out_ref.dtype)


# ------------------------------- wrapper ------------------------------------

def value_graph_conv_net_forward(h, adj_t, mask, params, *, mxu_dtype=jnp.bfloat16):
    """Fused forward pass of ValueGraphConvNet (all GraphConv layers in one kernel)."""
    n, f_in = h.shape
    out_dim = params[-1][0].shape[1]

    # pad nodes to a multiple of 8 (sublane); padded nodes have zero adjacency
    # and zero mask, so they do not affect real nodes and are sliced off below.
    pad = (-n) % 8
    npad = n + pad

    adj_p = jnp.pad(adj_t.astype(jnp.float32), ((0, pad), (0, pad)))
    h_p = jnp.pad(h.astype(jnp.float32), ((0, pad), (0, 0)))
    m_p = jnp.pad(mask.astype(jnp.float32).reshape(n), (0, pad))
    mask_col = m_p.reshape(npad, 1)
    mask_row = m_p.reshape(1, npad)

    inputs = [adj_p.astype(mxu_dtype), h_p, mask_col, mask_row]
    in_specs = [
        pl.BlockSpec((npad, npad), lambda i: (0, 0)),   # adj_t
        pl.BlockSpec((npad, f_in), lambda i: (0, 0)),   # feat
        pl.BlockSpec((npad, 1), lambda i: (0, 0)),      # mask (column)
        pl.BlockSpec((1, npad), lambda i: (0, 0)),      # mask (row)
    ]
    for (w, b) in params:
        fi = w.shape[0] // 2
        o = w.shape[1]
        # split the jump weight wrapper-side (free XLA slice; tile-aligned operands)
        inputs += [w[:fi].astype(mxu_dtype),
                   w[fi:].astype(mxu_dtype),
                   b.reshape(1, o).astype(jnp.float32)]
        in_specs += [pl.BlockSpec((fi, o), lambda i: (0, 0)),
                     pl.BlockSpec((fi, o), lambda i: (0, 0)),
                     pl.BlockSpec((1, o), lambda i: (0, 0))]

    kernel = functools.partial(_fused_vgcn_kernel,
                               num_layers=len(params), mxu_dtype=mxu_dtype)
    out = pl.pallas_call(
        kernel,
        out_shape=jax.ShapeDtypeStruct((npad, out_dim), jnp.float32),
        grid=(1,),
        in_specs=in_specs,
        out_specs=pl.BlockSpec((npad, out_dim), lambda i: (0, 0)),
        compiler_params=pltpu.CompilerParams(dimension_semantics=("arbitrary",)),
    )(*inputs)
    return out[:n]


# ---------------- parameter init (deterministic, matches __init__ shapes) ---

def _xavier_uniform(key, shape):
    fan_in, fan_out = shape
    bound = (6.0 / (fan_in + fan_out)) ** 0.5
    return jax.random.uniform(key, shape, jnp.float32, -bound, bound)


def init_value_graph_conv_net(key, input_dim, hidden_dim, output_dim, num_layers):
    dims = ([(input_dim, hidden_dim)]
            + [(hidden_dim, hidden_dim)] * (num_layers - 1)
            + [(hidden_dim, output_dim)])
    params = []
    for (i_d, o_d) in dims:
        key, sub = jax.random.split(key)
        w = _xavier_uniform(sub, (2 * i_d, o_d))   # jump=True -> 2*in_feats
        b = jnp.zeros((o_d,), jnp.float32)
        params.append((w, b))
    return params


# ---------------- pure-JAX reference (correctness check) --------------------

def _reference_forward(h, adj_t, mask, params):
    n_layers = len(params)
    mask2 = mask.reshape(-1, 1).astype(jnp.float32)
    for li, (w, b) in enumerate(params):
        feat = h
        deg = adj_t @ mask2
        norm = jnp.where(deg == 0.0, 1.0, deg ** -0.5)
        f = mask2 * (feat * norm)
        agg = (adj_t @ f) * norm
        rst = jnp.concatenate([agg, feat], axis=-1) @ w + b
        if li < n_layers - 1:
            rst = jnp.maximum(rst, 0.0)
        h = rst
    return h


if __name__ == "__main__":
    key = jax.random.PRNGKey(0)
    k_graph, k_feat, k_mask, k_params = jax.random.split(key, 4)

    N = 16               # nodes
    INPUT_DIM = 8
    HIDDEN_DIM = 32
    OUTPUT_DIM = 1
    NUM_LAYERS = 2       # -> 3 GraphConv layers total

    # dense adjacency, adj_t[dst, src] = 1.0 iff edge src->dst (no self loops)
    adj = jax.random.bernoulli(k_graph, 0.3, (N, N)).astype(jnp.float32)
    adj = adj * (1.0 - jnp.eye(N, dtype=jnp.float32))
    adj_t = adj.T

    h0 = jax.random.normal(k_feat, (N, INPUT_DIM), jnp.float32)
    mask = jax.random.bernoulli(k_mask, 0.8, (N,)).astype(jnp.float32)

    params = init_value_graph_conv_net(k_params, INPUT_DIM, HIDDEN_DIM,
                                       OUTPUT_DIM, NUM_LAYERS)

    ref = _reference_forward(h0, adj_t, mask, params)

    # strict semantic check: fused kernel in full f32
    out_f32 = jax.block_until_ready(
        value_graph_conv_net_forward(h0, adj_t, mask, params,
                                     mxu_dtype=jnp.float32))
    assert out_f32.shape == (N, OUTPUT_DIM)
    assert jnp.allclose(out_f32, ref, atol=1e-4, rtol=1e-4), (out_f32, ref)

    # fast path: bf16 MXU operands, f32 accumulation (looser tolerance expected)
    out_bf16 = jax.block_until_ready(
        value_graph_conv_net_forward(h0, adj_t, mask, params,
                                     mxu_dtype=jnp.bfloat16))
    assert out_bf16.shape == (N, OUTPUT_DIM)
    assert jnp.allclose(out_bf16, ref, atol=5e-2, rtol=5e-2), (out_bf16, ref)

    print("KERNEL_OK")
</pallas_src>

<mosaic_0001>
module attributes {stable_mosaic.version = 11 : i64} {
  func.func @_fused_vgcn_kernel(%arg0: i32, %arg1: memref<16x16xf32, #tpu.memory_space<vmem>>, %arg2: memref<16x8xf32, #tpu.memory_space<vmem>>, %arg3: memref<16x1xf32, #tpu.memory_space<vmem>>, %arg4: memref<1x16xf32, #tpu.memory_space<vmem>>, %arg5: memref<8x32xf32, #tpu.memory_space<vmem>>, %arg6: memref<8x32xf32, #tpu.memory_space<vmem>>, %arg7: memref<1x32xf32, #tpu.memory_space<vmem>>, %arg8: memref<32x32xf32, #tpu.memory_space<vmem>>, %arg9: memref<32x32xf32, #tpu.memory_space<vmem>>, %arg10: memref<1x32xf32, #tpu.memory_space<vmem>>, %arg11: memref<32x1xf32, #tpu.memory_space<vmem>>, %arg12: memref<32x1xf32, #tpu.memory_space<vmem>>, %arg13: memref<1x1xf32, #tpu.memory_space<vmem>>, %arg14: memref<16x1xf32, #tpu.memory_space<vmem>>) attributes {dimension_semantics = [#tpu.dimension_semantics<arbitrary>], iteration_bounds = array<i64: 1>, scalar_prefetch = 0 : i64, scratch_operands = 0 : i64, tpu.core_type = #tpu.core_type<tc>, window_params = [{pipeline_mode = #tpu.pipeline_mode<synchronous>, transform_indices = @transform_0, window_bounds = array<i64: 16, 16>}, {pipeline_mode = #tpu.pipeline_mode<synchronous>, transform_indices = @transform_1, window_bounds = array<i64: 16, 8>}, {pipeline_mode = #tpu.pipeline_mode<synchronous>, transform_indices = @transform_2, window_bounds = array<i64: 16, 1>}, {pipeline_mode = #tpu.pipeline_mode<synchronous>, transform_indices = @transform_3, window_bounds = array<i64: 1, 16>}, {pipeline_mode = #tpu.pipeline_mode<synchronous>, transform_indices = @transform_4, window_bounds = array<i64: 8, 32>}, {pipeline_mode = #tpu.pipeline_mode<synchronous>, transform_indices = @transform_5, window_bounds = array<i64: 8, 32>}, {pipeline_mode = #tpu.pipeline_mode<synchronous>, transform_indices = @transform_6, window_bounds = array<i64: 1, 32>}, {pipeline_mode = #tpu.pipeline_mode<synchronous>, transform_indices = @transform_7, window_bounds = array<i64: 32, 32>}, {pipeline_mode = #tpu.pipeline_mode<synchronous>, transform_indices = @transform_8, window_bounds = array<i64: 32, 32>}, {pipeline_mode = #tpu.pipeline_mode<synchronous>, transform_indices = @transform_9, window_bounds = array<i64: 1, 32>}, {pipeline_mode = #tpu.pipeline_mode<synchronous>, transform_indices = @transform_10, window_bounds = array<i64: 32, 1>}, {pipeline_mode = #tpu.pipeline_mode<synchronous>, transform_indices = @transform_11, window_bounds = array<i64: 32, 1>}, {pipeline_mode = #tpu.pipeline_mode<synchronous>, transform_indices = @transform_12, window_bounds = array<i64: 1, 1>}, {pipeline_mode = #tpu.pipeline_mode<synchronous>, transform_indices = @transform_13, window_bounds = array<i64: 16, 1>}]} {
    %c0 = arith.constant 0 : index
    %c0_0 = arith.constant 0 : index
    %0 = vector.load %arg1[%c0, %c0_0] : memref<16x16xf32, #tpu.memory_space<vmem>>, vector<16x16xf32>
    %c0_1 = arith.constant 0 : index
    %c0_2 = arith.constant 0 : index
    %1 = vector.load %arg3[%c0_1, %c0_2] : memref<16x1xf32, #tpu.memory_space<vmem>>, vector<16x1xf32>
    %c0_3 = arith.constant 0 : index
    %c0_4 = arith.constant 0 : index
    %2 = vector.load %arg4[%c0_3, %c0_4] : memref<1x16xf32, #tpu.memory_space<vmem>>, vector<1x16xf32>
    %3 = vector.broadcast %2 : vector<1x16xf32> to vector<16x16xf32>
    %4 = arith.mulf %0, %3 : vector<16x16xf32>
    %cst = arith.constant dense<0.000000e+00> : vector<16xf32>
    %5 = vector.multi_reduction <add>, %4, %cst [1] : vector<16x16xf32> to vector<16xf32>
    %6 = vector.shape_cast %5 : vector<16xf32> to vector<16x1xf32>
    %cst_5 = arith.constant 0.000000e+00 : f32
    %7 = vector.broadcast %cst_5 : f32 to vector<16x1xf32>
    %8 = arith.cmpf oeq, %6, %7 : vector<16x1xf32>
    %9 = math.rsqrt %6 : vector<16x1xf32>
    %cst_6 = arith.constant 1.000000e+00 : f32
    %10 = vector.broadcast %cst_6 : f32 to vector<16x1xf32>
    %11 = arith.select %8, %10, %9 : vector<16x1xi1>, vector<16x1xf32>
    %12 = arith.mulf %1, %11 : vector<16x1xf32>
    %13 = vector.broadcast %11 : vector<16x1xf32> to vector<16x16xf32>
    %14 = arith.mulf %13, %0 : vector<16x16xf32>
    %c0_7 = arith.constant 0 : index
    %c0_8 = arith.constant 0 : index
    %15 = vector.load %arg2[%c0_7, %c0_8] : memref<16x8xf32, #tpu.memory_space<vmem>>, vector<16x8xf32>
    %c0_9 = arith.constant 0 : index
    %c0_10 = arith.constant 0 : index
    %16 = vector.load %arg5[%c0_9, %c0_10] : memref<8x32xf32, #tpu.memory_space<vmem>>, vector<8x32xf32>
    %c0_11 = arith.constant 0 : index
    %c0_12 = arith.constant 0 : index
    %17 = vector.load %arg6[%c0_11, %c0_12] : memref<8x32xf32, #tpu.memory_space<vmem>>, vector<8x32xf32>
    %c0_13 = arith.constant 0 : index
    %c0_14 = arith.constant 0 : index
    %18 = vector.load %arg7[%c0_13, %c0_14] : memref<1x32xf32, #tpu.memory_space<vmem>>, vector<1x32xf32>
    %19 = vector.broadcast %12 : vector<16x1xf32> to vector<16x8xf32>
    %20 = arith.mulf %19, %15 : vector<16x8xf32>
    %cst_15 = arith.constant dense<0.000000e+00> : vector<16x8xf32>
    %21 = tpu.matmul %14, %20, %cst_15 {dimension_numbers = #tpu.dot_dimension_numbers<[1], [0], [0], [1], [0, 0, 1, 1], [], []>} : vector<16x16xf32>, vector<16x8xf32>, vector<16x8xf32> -> vector<16x8xf32>
    %cst_16 = arith.constant dense<0.000000e+00> : vector<16x32xf32>
    %22 = tpu.matmul %21, %16, %cst_16 {dimension_numbers = #tpu.dot_dimension_numbers<[1], [0], [0], [1], [0, 0, 1, 1], [], []>} : vector<16x8xf32>, vector<8x32xf32>, vector<16x32xf32> -> vector<16x32xf32>
    %cst_17 = arith.constant dense<0.000000e+00> : vector<16x32xf32>
    %23 = tpu.matmul %15, %17, %cst_17 {dimension_numbers = #tpu.dot_dimension_numbers<[1], [0], [0], [1], [0, 0, 1, 1], [], []>} : vector<16x8xf32>, vector<8x32xf32>, vector<16x32xf32> -> vector<16x32xf32>
    %24 = arith.addf %22, %23 : vector<16x32xf32>
    %25 = vector.broadcast %18 : vector<1x32xf32> to vector<16x32xf32>
    %26 = arith.addf %24, %25 : vector<16x32xf32>
    %cst_18 = arith.constant 0.000000e+00 : f32
    %27 = vector.broadcast %cst_18 : f32 to vector<16x32xf32>
    %28 = arith.maximumf %26, %27 : vector<16x32xf32>
    %c0_19 = arith.constant 0 : index
    %c0_20 = arith.constant 0 : index
    %29 = vector.load %arg8[%c0_19, %c0_20] : memref<32x32xf32, #tpu.memory_space<vmem>>, vector<32x32xf32>
    %c0_21 = arith.constant 0 : index
    %c0_22 = arith.constant 0 : index
    %30 = vector.load %arg9[%c0_21, %c0_22] : memref<32x32xf32, #tpu.memory_space<vmem>>, vector<32x32xf32>
    %c0_23 = arith.constant 0 : index
    %c0_24 = arith.constant 0 : index
    %31 = vector.load %arg10[%c0_23, %c0_24] : memref<1x32xf32, #tpu.memory_space<vmem>>, vector<1x32xf32>
    %32 = vector.broadcast %12 : vector<16x1xf32> to vector<16x32xf32>
    %33 = arith.mulf %32, %28 : vector<16x32xf32>
    %cst_25 = arith.constant dense<0.000000e+00> : vector<16x32xf32>
    %34 = tpu.matmul %14, %33, %cst_25 {dimension_numbers = #tpu.dot_dimension_numbers<[1], [0], [0], [1], [0, 0, 1, 1], [], []>} : vector<16x16xf32>, vector<16x32xf32>, vector<16x32xf32> -> vector<16x32xf32>
    %cst_26 = arith.constant dense<0.000000e+00> : vector<16x32xf32>
    %35 = tpu.matmul %34, %29, %cst_26 {dimension_numbers = #tpu.dot_dimension_numbers<[1], [0], [0], [1], [0, 0, 1, 1], [], []>} : vector<16x32xf32>, vector<32x32xf32>, vector<16x32xf32> -> vector<16x32xf32>
    %cst_27 = arith.constant dense<0.000000e+00> : vector<16x32xf32>
    %36 = tpu.matmul %28, %30, %cst_27 {dimension_numbers = #tpu.dot_dimension_numbers<[1], [0], [0], [1], [0, 0, 1, 1], [], []>} : vector<16x32xf32>, vector<32x32xf32>, vector<16x32xf32> -> vector<16x32xf32>
    %37 = arith.addf %35, %36 : vector<16x32xf32>
    %38 = vector.broadcast %31 : vector<1x32xf32> to vector<16x32xf32>
    %39 = arith.addf %37, %38 : vector<16x32xf32>
    %cst_28 = arith.constant 0.000000e+00 : f32
    %40 = vector.broadcast %cst_28 : f32 to vector<16x32xf32>
    %41 = arith.maximumf %39, %40 : vector<16x32xf32>
    %c0_29 = arith.constant 0 : index
    %c0_30 = arith.constant 0 : index
    %42 = vector.load %arg11[%c0_29, %c0_30] : memref<32x1xf32, #tpu.memory_space<vmem>>, vector<32x1xf32>
    %c0_31 = arith.constant 0 : index
    %c0_32 = arith.constant 0 : index
    %43 = vector.load %arg12[%c0_31, %c0_32] : memref<32x1xf32, #tpu.memory_space<vmem>>, vector<32x1xf32>
    %c0_33 = arith.constant 0 : index
    %c0_34 = arith.constant 0 : index
    %44 = vector.load %arg13[%c0_33, %c0_34] : memref<1x1xf32, #tpu.memory_space<vmem>>, vector<1x1xf32>
    %45 = vector.broadcast %12 : vector<16x1xf32> to vector<16x32xf32>
    %46 = arith.mulf %45, %41 : vector<16x32xf32>
    %cst_35 = arith.constant dense<0.000000e+00> : vector<16x32xf32>
    %47 = tpu.matmul %14, %46, %cst_35 {dimension_numbers = #tpu.dot_dimension_numbers<[1], [0], [0], [1], [0, 0, 1, 1], [], []>} : vector<16x16xf32>, vector<16x32xf32>, vector<16x32xf32> -> vector<16x32xf32>
    %cst_36 = arith.constant dense<0.000000e+00> : vector<16x1xf32>
    %48 = tpu.matmul %47, %42, %cst_36 {dimension_numbers = #tpu.dot_dimension_numbers<[1], [0], [0], [1], [0, 0, 1, 1], [], []>} : vector<16x32xf32>, vector<32x1xf32>, vector<16x1xf32> -> vector<16x1xf32>
    %cst_37 = arith.constant dense<0.000000e+00> : vector<16x1xf32>
    %49 = tpu.matmul %41, %43, %cst_37 {dimension_numbers = #tpu.dot_dimension_numbers<[1], [0], [0], [1], [0, 0, 1, 1], [], []>} : vector<16x32xf32>, vector<32x1xf32>, vector<16x1xf32> -> vector<16x1xf32>
    %50 = arith.addf %48, %49 : vector<16x1xf32>
    %51 = vector.broadcast %44 : vector<1x1xf32> to vector<16x1xf32>
    %52 = arith.addf %50, %51 : vector<16x1xf32>
    %c0_38 = arith.constant 0 : index
    %c0_39 = arith.constant 0 : index
    %53 = vector.load %arg14[%c0_38, %c0_39] : memref<16x1xf32, #tpu.memory_space<vmem>>, vector<16x1xf32>
    tpu.vector_store %arg14[%c0_38, %c0_39], %52 {strides = array<i32>} : memref<16x1xf32, #tpu.memory_space<vmem>>, vector<16x1xf32>,
    return
  }
  func.func @transform_0(%arg0: i32) -> (i32, i32) {
    %c0_i32 = arith.constant 0 : i32
    %c0_i32_0 = arith.constant 0 : i32
    %c0_i32_1 = arith.constant 0 : i32
    return %c0_i32, %c0_i32_0 : i32, i32
  }
  func.func @transform_1(%arg0: i32) -> (i32, i32) {
    %c0_i32 = arith.constant 0 : i32
    %c0_i32_0 = arith.constant 0 : i32
    %c0_i32_1 = arith.constant 0 : i32
    return %c0_i32, %c0_i32_0 : i32, i32
  }
  func.func @transform_2(%arg0: i32) -> (i32, i32) {
    %c0_i32 = arith.constant 0 : i32
    %c0_i32_0 = arith.constant 0 : i32
    %c0_i32_1 = arith.constant 0 : i32
    return %c0_i32, %c0_i32_0 : i32, i32
  }
  func.func @transform_3(%arg0: i32) -> (i32, i32) {
    %c0_i32 = arith.constant 0 : i32
    %c0_i32_0 = arith.constant 0 : i32
    %c0_i32_1 = arith.constant 0 : i32
    return %c0_i32, %c0_i32_0 : i32, i32
  }
  func.func @transform_4(%arg0: i32) -> (i32, i32) {
    %c0_i32 = arith.constant 0 : i32
    %c0_i32_0 = arith.constant 0 : i32
    %c0_i32_1 = arith.constant 0 : i32
    return %c0_i32, %c0_i32_0 : i32, i32
  }
  func.func @transform_5(%arg0: i32) -> (i32, i32) {
    %c0_i32 = arith.constant 0 : i32
    %c0_i32_0 = arith.constant 0 : i32
    %c0_i32_1 = arith.constant 0 : i32
    return %c0_i32, %c0_i32_0 : i32, i32
  }
  func.func @transform_6(%arg0: i32) -> (i32, i32) {
    %c0_i32 = arith.constant 0 : i32
    %c0_i32_0 = arith.constant 0 : i32
    %c0_i32_1 = arith.constant 0 : i32
    return %c0_i32, %c0_i32_0 : i32, i32
  }
  func.func @transform_7(%arg0: i32) -> (i32, i32) {
    %c0_i32 = arith.constant 0 : i32
    %c0_i32_0 = arith.constant 0 : i32
    %c0_i32_1 = arith.constant 0 : i32
    return %c0_i32, %c0_i32_0 : i32, i32
  }
  func.func @transform_8(%arg0: i32) -> (i32, i32) {
    %c0_i32 = arith.constant 0 : i32
    %c0_i32_0 = arith.constant 0 : i32
    %c0_i32_1 = arith.constant 0 : i32
    return %c0_i32, %c0_i32_0 : i32, i32
  }
  func.func @transform_9(%arg0: i32) -> (i32, i32) {
    %c0_i32 = arith.constant 0 : i32
    %c0_i32_0 = arith.constant 0 : i32
    %c0_i32_1 = arith.constant 0 : i32
    return %c0_i32, %c0_i32_0 : i32, i32
  }
  func.func @transform_10(%arg0: i32) -> (i32, i32) {
    %c0_i32 = arith.constant 0 : i32
    %c0_i32_0 = arith.constant 0 : i32
    %c0_i32_1 = arith.constant 0 : i32
    return %c0_i32, %c0_i32_0 : i32, i32
  }
  func.func @transform_11(%arg0: i32) -> (i32, i32) {
    %c0_i32 = arith.constant 0 : i32
    %c0_i32_0 = arith.constant 0 : i32
    %c0_i32_1 = arith.constant 0 : i32
    return %c0_i32, %c0_i32_0 : i32, i32
  }
  func.func @transform_12(%arg0: i32) -> (i32, i32) {
    %c0_i32 = arith.constant 0 : i32
    %c0_i32_0 = arith.constant 0 : i32
    %c0_i32_1 = arith.constant 0 : i32
    return %c0_i32, %c0_i32_0 : i32, i32
  }
  func.func @transform_13(%arg0: i32) -> (i32, i32) {
    %c0_i32 = arith.constant 0 : i32
    %c0_i32_0 = arith.constant 0 : i32
    %c0_i32_1 = arith.constant 0 : i32
    return %c0_i32, %c0_i32_0 : i32, i32
  }
}

</mosaic_0001>

<llo_original>
// kernel: tpu_custom_call.1
$region0: #{tpu_custom_call.1}
  #allocation0 [shape = 'u32[]', space=smem, size = 0x4, offset = 0x4, fixed_abs, tag = 'smem constant byte address 0x4 - core index']
  #allocation1 [shape = 'u32[144,128]{1,0:T(1,128)}', space=vmem, size = 0x12000, scoped, tag = 'internal scratch']
  #allocation2 [shape = 'f32[1,1]{1,0:T(1,128)S(1)}', space=vmem, size = 0x200, scoped, tag = 'scoped memory for tpu_custom_call.1']
  %s0 = inlined_call_operand.vmem [shape: f32[16,16], index: 0, kind: input, shape index: {}]
  %s1 = inlined_call_operand.vmem [shape: f32[16,8], index: 1, kind: input, shape index: {}]
  %s2 = inlined_call_operand.vmem [shape: f32[16,1], index: 2, kind: input, shape index: {}]
  %s3 = inlined_call_operand.vmem [shape: f32[1,16], index: 3, kind: input, shape index: {}]
  %s4 = inlined_call_operand.vmem [shape: f32[8,32], index: 4, kind: input, shape index: {}]
  %s5 = inlined_call_operand.vmem [shape: f32[8,32], index: 5, kind: input, shape index: {}]
  %s6 = inlined_call_operand.vmem [shape: f32[1,32], index: 6, kind: input, shape index: {}]
  %s7 = inlined_call_operand.vmem [shape: f32[32,32], index: 7, kind: input, shape index: {}]
  %s8 = inlined_call_operand.vmem [shape: f32[32,32], index: 8, kind: input, shape index: {}]
  %s9 = inlined_call_operand.vmem [shape: f32[1,32], index: 9, kind: input, shape index: {}]
  %s10 = inlined_call_operand.vmem [shape: f32[32,1], index: 10, kind: input, shape index: {}]
  %s11 = inlined_call_operand.vmem [shape: f32[32,1], index: 11, kind: input, shape index: {}]
  %s12 = inlined_call_operand.<no memory space> [shape: f32[1,1], index: 12, kind: input, shape index: {}]
  %s13 = inlined_call_operand.vmem [shape: f32[16,1], index: 13, kind: output, shape index: {}]
  %s14 = sld [smem:[#allocation0]]
  $region62: #{tpu_custom_call.1} parent=0
    _
  %s16 = ssub.s32 1, %s14
  %s17 = scalar_select 0, %s16, %s14
  %v18 = vstv %s12
  %19 = vst [vmem:[#allocation2] sm:$0x1] %v18
  // Predicated region
  $region2: #{tpu_custom_call.1} parent=0 // pred_check
    _
  $region3: #{tpu_custom_call.1} parent=0 // pred_check_branch
    %21 = sbr.rel (0) target = $region5
  $region4: #{tpu_custom_call.1} parent=0 // pred_region
    _
  $region5: #{tpu_custom_call.1} parent=0 // pred_fallthru
    _
  // Predicated region
  $region6: #{tpu_custom_call.1} parent=0 // pred_check
    _
  $region7: #{tpu_custom_call.1} parent=0 // pred_check_branch
    %23 = sbr.rel (0) target = $region9
  $region8: #{tpu_custom_call.1} parent=0 // pred_region
    _
  $region9: #{tpu_custom_call.1} parent=0 // pred_fallthru
    _
  // Predicated region
  $region10: #{tpu_custom_call.1} parent=0 // pred_check
    _
  $region11: #{tpu_custom_call.1} parent=0 // pred_check_branch
    %25 = sbr.rel (0) target = $region13
  $region12: #{tpu_custom_call.1} parent=0 // pred_region
    _
  $region13: #{tpu_custom_call.1} parent=0 // pred_fallthru
    _
  // Predicated region
  $region14: #{tpu_custom_call.1} parent=0 // pred_check
    _
  $region15: #{tpu_custom_call.1} parent=0 // pred_check_branch
    %27 = sbr.rel (0) target = $region17
  $region16: #{tpu_custom_call.1} parent=0 // pred_region
    _
  $region17: #{tpu_custom_call.1} parent=0 // pred_fallthru
    _
  // Predicated region
  $region18: #{tpu_custom_call.1} parent=0 // pred_check
    _
  $region19: #{tpu_custom_call.1} parent=0 // pred_check_branch
    %29 = sbr.rel (0) target = $region21
  $region20: #{tpu_custom_call.1} parent=0 // pred_region
    _
  $region21: #{tpu_custom_call.1} parent=0 // pred_fallthru
    _
  // Predicated region
  $region22: #{tpu_custom_call.1} parent=0 // pred_check
    _
  $region23: #{tpu_custom_call.1} parent=0 // pred_check_branch
    %31 = sbr.rel (0) target = $region25
  $region24: #{tpu_custom_call.1} parent=0 // pred_region
    _
  $region25: #{tpu_custom_call.1} parent=0 // pred_fallthru
    _
  // Predicated region
  $region26: #{tpu_custom_call.1} parent=0 // pred_check
    _
  $region27: #{tpu_custom_call.1} parent=0 // pred_check_branch
    %33 = sbr.rel (0) target = $region29
  $region28: #{tpu_custom_call.1} parent=0 // pred_region
    _
  $region29: #{tpu_custom_call.1} parent=0 // pred_fallthru
    _
  // Predicated region
  $region30: #{tpu_custom_call.1} parent=0 // pred_check
    _
  $region31: #{tpu_custom_call.1} parent=0 // pred_check_branch
    %35 = sbr.rel (0) target = $region33
  $region32: #{tpu_custom_call.1} parent=0 // pred_region
    _
  $region33: #{tpu_custom_call.1} parent=0 // pred_fallthru
    _
  // Predicated region
  $region34: #{tpu_custom_call.1} parent=0 // pred_check
    _
  $region35: #{tpu_custom_call.1} parent=0 // pred_check_branch
    %37 = sbr.rel (0) target = $region37
  $region36: #{tpu_custom_call.1} parent=0 // pred_region
    _
  $region37: #{tpu_custom_call.1} parent=0 // pred_fallthru
    _
  // Predicated region
  $region38: #{tpu_custom_call.1} parent=0 // pred_check
    _
  $region39: #{tpu_custom_call.1} parent=0 // pred_check_branch
    %39 = sbr.rel (0) target = $region41
  $region40: #{tpu_custom_call.1} parent=0 // pred_region
    _
  $region41: #{tpu_custom_call.1} parent=0 // pred_fallthru
    _
  // Predicated region
  $region42: #{tpu_custom_call.1} parent=0 // pred_check
    _
  $region43: #{tpu_custom_call.1} parent=0 // pred_check_branch
    %41 = sbr.rel (0) target = $region45
  $region44: #{tpu_custom_call.1} parent=0 // pred_region
    _
  $region45: #{tpu_custom_call.1} parent=0 // pred_fallthru
    _
  // Predicated region
  $region46: #{tpu_custom_call.1} parent=0 // pred_check
    _
  $region47: #{tpu_custom_call.1} parent=0 // pred_check_branch
    %43 = sbr.rel (0) target = $region49
  $region48: #{tpu_custom_call.1} parent=0 // pred_region
    _
  $region49: #{tpu_custom_call.1} parent=0 // pred_fallthru
    _
  // Predicated region
  $region50: #{tpu_custom_call.1} parent=0 // pred_check
    _
  $region51: #{tpu_custom_call.1} parent=0 // pred_check_branch
    %45 = sbr.rel (0) target = $region53
  $region52: #{tpu_custom_call.1} parent=0 // pred_region
    _
  $region53: #{tpu_custom_call.1} parent=0 // pred_fallthru
    _
  %v46 = vld [vmem:[%s0] sm:$0xff]
  %v47 = vld [vmem:[%s0 + $0x8] sm:$0xff]
  %v48 = vld [vmem:[%s2] sm:$0xff]
  %v49 = vld [vmem:[%s2 + $0x8] sm:$0xff]
  %v50 = vld [vmem:[%s3] sm:$0x1]
  %v52 = vlaneseq
  %v53 = vshrl.u32 %v52, 7
  %v54 = vsub.s32 0, %v53
  %v55 = vrot.slane %v50, %v54
  %v57 = vmul.f32 %v46, %v55
  %v58 = vmul.f32 %v47, %v55
  %vm59 = vcmask 130048
  %v60 = vsel %vm59, %v57, 0.0
  %61 = vadd.xlane.f32.xlu0 %v60
  %v62 = vpop.xlane.xlu0 %61
  %v63 = vsel %vm59, %v58, 0.0
  %64 = vadd.xlane.f32.xlu0 %v63
  %v65 = vpop.xlane.xlu0 %64
  %vm66 = vcmp.eq.f32.partialorder %v62, 0.0
  %vm67 = vcmp.eq.f32.partialorder %v65, 0.0
  %v68 = vrsqrt.pop %v62
  %v69 = vrsqrt.pop %v65
  %v70 = vsel %vm66, 1.0, %v68
  %v71 = vsel %vm67, 1.0, %v69
  %v72 = vmul.f32 %v48, %v70
  %v73 = vmul.f32 %v49, %v71
  %v74 = vmul.f32 %v70, %v46
  %v75 = vmul.f32 %v71, %v47
  %v76 = vld [vmem:[%s1] sm:$0xff]
  %v77 = vld [vmem:[%s1 + $0x8] sm:$0xff]
  %v78 = vld [vmem:[%s4] sm:$0xff]
  %v79 = vld [vmem:[%s5] sm:$0xff]
  %v80 = vld [vmem:[%s6] sm:$0x1]
  %82 = vset.pattern.permute.xlu0 0
  %83 = vperm.xlu0 %82, %v72
  %v84 = vpop.permute.xlu0 %83
  %87 = vset.pattern.permute.xlu0 0
  %88 = vperm.xlu0 %87, %v73
  %v89 = vpop.permute.xlu0 %88
  %v91 = vmul.f32 %v84, %v76
  %v92 = vmul.f32 %v89, %v77
  %v94 = vsel %vm59, %v74, 0
  %v97 = vsel %vm59, %v75, 0
  %99 = vmatprep.subr.mxu0 0.0
  %100 = vmatpush1.msra.mxu0 0.0
  %101 = vmatprep.subr.mxu0 0.0
  %102 = vmatpush1.msra.mxu0 0.0
  %103 = vmatprep.subr.mxu0 0.0
  %104 = vmatpush1.msra.mxu0 0.0
  %105 = vmatprep.subr.mxu0 0.0
  %106 = vmatpush1.msra.mxu0 0.0
  %107 = vmatprep.subr.mxu0 0.0
  %108 = vmatpush1.msra.mxu0 0.0
  %109 = vmatprep.subr.mxu0 0.0
  %110 = vmatpush1.msra.mxu0 0.0
  %111 = vmatprep.subr.mxu0 0.0
  %112 = vmatpush1.msra.mxu0 0.0
  %113 = vmatprep.subr.mxu0 0.0
  %114 = vmatpush1.msra.mxu0 0.0
  %115 = vmatprep.subr.mxu0 0.0
  %116 = vmatpush1.msra.mxu0 0.0
  %117 = vmatprep.subr.mxu0 0.0
  %118 = vmatpush1.msra.mxu0 0.0
  %119 = vmatprep.subr.mxu0 0.0
  %120 = vmatpush1.msra.mxu0 0.0
  %121 = vmatprep.subr.mxu0 0.0
  %122 = vmatpush1.msra.mxu0 0.0
  %123 = vmatprep.subr.mxu0 0.0
  %124 = vmatpush1.msra.mxu0 0.0
  %125 = vmatprep.subr.mxu0 0.0
  %126 = vmatpush1.msra.mxu0 0.0
  %127 = vmatprep.subr.mxu0 0.0
  %128 = vmatpush1.msra.mxu0 %v92
  %129 = vmatprep.subr.mxu0 0.0
  %130 = vmatpush1.msra.mxu0 %v91
  %131 = vmatprep.subr.mxu0 0.0
  %132 = vmatpush2.msra.mxu0 0.0
  %133 = vmatprep.subr.mxu0 0.0
  %134 = vmatpush2.msra.mxu0 0.0
  %135 = vmatprep.subr.mxu0 0.0
  %136 = vmatpush2.msra.mxu0 0.0
  %137 = vmatprep.subr.mxu0 0.0
  %138 = vmatpush2.msra.mxu0 0.0
  %139 = vmatprep.subr.mxu0 0.0
  %140 = vmatpush2.msra.mxu0 0.0
  %141 = vmatprep.subr.mxu0 0.0
  %142 = vmatpush2.msra.mxu0 0.0
  %143 = vmatprep.subr.mxu0 0.0
  %144 = vmatpush2.msra.mxu0 0.0
  %145 = vmatprep.subr.mxu0 0.0
  %146 = vmatpush2.msra.mxu0 0.0
  %147 = vmatprep.subr.mxu0 0.0
  %148 = vmatpush2.msra.mxu0 0.0
  %149 = vmatprep.subr.mxu0 0.0
  %150 = vmatpush2.msra.mxu0 0.0
  %151 = vmatprep.subr.mxu0 0.0
  %152 = vmatpush2.msra.mxu0 0.0
  %153 = vmatprep.subr.mxu0 0.0
  %154 = vmatpush2.msra.mxu0 0.0
  %155 = vmatprep.subr.mxu0 0.0
  %156 = vmatpush2.msra.mxu0 0.0
  %157 = vmatprep.subr.mxu0 0.0
  %158 = vmatpush2.msra.mxu0 0.0
  %159 = vmatprep.subr.mxu0 0.0
  %160 = vmatpush2.msra.mxu0 0.0
  %161 = vmatprep.subr.mxu0 0.0
  %162 = vmatpush2.msra.mxu0 0.0
  %163 = vmatprep.mubr.f32.mxu0 0.0
  %164 = vmatmul.mubr.f32.gmra.mxu0 %v94
  %v165 = vpop.f32.mrf.mxu0
  %v166 = vadd.f32 0.0, %v165
  %v167 = vpop.f32.mrf.mxu0
  %168 = vmatprep.mubr.f32.mxu0 0.0
  %169 = vmatmul.mubr.f32.gmra.mxu0 %v97
  %v170 = vpop.f32.mrf.mxu0
  %v171 = vadd.f32 0.0, %v170
  %v172 = vpop.f32.mrf.mxu0
  %173 = vdwg.mxu0
  %vm174 = vcmask 64512
  %v176 = vsel %vm174, %v76, 0
  %v179 = vsel %vm174, %v77, 0
  %181 = vmatprep.subr.mxu0 0.0
  %182 = vmatpush1.msra.mxu0 0.0
  %183 = vmatprep.subr.mxu0 0.0
  %184 = vmatpush1.msra.mxu0 0.0
  %185 = vmatprep.subr.mxu0 0.0
  %186 = vmatpush1.msra.mxu0 0.0
  %187 = vmatprep.subr.mxu0 0.0
  %188 = vmatpush1.msra.mxu0 0.0
  %189 = vmatprep.subr.mxu0 0.0
  %190 = vmatpush1.msra.mxu0 0.0
  %191 = vmatprep.subr.mxu0 0.0
  %192 = vmatpush1.msra.mxu0 0.0
  %193 = vmatprep.subr.mxu0 0.0
  %194 = vmatpush1.msra.mxu0 0.0
  %195 = vmatprep.subr.mxu0 0.0
  %196 = vmatpush1.msra.mxu0 0.0
  %197 = vmatprep.subr.mxu0 0.0
  %198 = vmatpush1.msra.mxu0 0.0
  %199 = vmatprep.subr.mxu0 0.0
  %200 = vmatpush1.msra.mxu0 0.0
  %201 = vmatprep.subr.mxu0 0.0
  %202 = vmatpush1.msra.mxu0 0.0
  %203 = vmatprep.subr.mxu0 0.0
  %204 = vmatpush1.msra.mxu0 0.0
  %205 = vmatprep.subr.mxu0 0.0
  %206 = vmatpush1.msra.mxu0 0.0
  %207 = vmatprep.subr.mxu0 0.0
  %208 = vmatpush1.msra.mxu0 0.0
  %209 = vmatprep.subr.mxu0 0.0
  %210 = vmatpush1.msra.mxu0 0.0
  %211 = vmatprep.subr.mxu0 0.0
  %212 = vmatpush1.msra.mxu0 %v79
  %213 = vmatprep.subr.mxu0 0.0
  %214 = vmatpush2.msra.mxu0 0.0
  %215 = vmatprep.subr.mxu0 0.0
  %216 = vmatpush2.msra.mxu0 0.0
  %217 = vmatprep.subr.mxu0 0.0
  %218 = vmatpush2.msra.mxu0 0.0
  %219 = vmatprep.subr.mxu0 0.0
  %220 = vmatpush2.msra.mxu0 0.0
  %221 = vmatprep.subr.mxu0 0.0
  %222 = vmatpush2.msra.mxu0 0.0
  %223 = vmatprep.subr.mxu0 0.0
  %224 = vmatpush2.msra.mxu0 0.0
  %225 = vmatprep.subr.mxu0 0.0
  %226 = vmatpush2.msra.mxu0 0.0
  %227 = vmatprep.subr.mxu0 0.0
  %228 = vmatpush2.msra.mxu0 0.0
  %229 = vmatprep.subr.mxu0 0.0
  %230 = vmatpush2.msra.mxu0 0.0
  %231 = vmatprep.subr.mxu0 0.0
  %232 = vmatpush2.msra.mxu0 0.0
  %233 = vmatprep.subr.mxu0 0.0
  %234 = vmatpush2.msra.mxu0 0.0
  %235 = vmatprep.subr.mxu0 0.0
  %236 = vmatpush2.msra.mxu0 0.0
  %237 = vmatprep.subr.mxu0 0.0
  %238 = vmatpush2.msra.mxu0 0.0
  %239 = vmatprep.subr.mxu0 0.0
  %240 = vmatpush2.msra.mxu0 0.0
  %241 = vmatprep.subr.mxu0 0.0
  %242 = vmatpush2.msra.mxu0 0.0
  %243 = vmatprep.subr.mxu0 0.0
  %244 = vmatpush2.msra.mxu0 0.0
  %245 = vmatprep.mubr.f32.mxu0 0.0
  %246 = vmatmul.mubr.f32.gmra.mxu0 %v176
  %v247 = vpop.f32.mrf.mxu0
  %v248 = vadd.f32 0.0, %v247
  %v249 = vpop.f32.mrf.mxu0
  %250 = vmatprep.mubr.f32.mxu0 0.0
  %251 = vmatmul.mubr.f32.gmra.mxu0 %v179
  %v252 = vpop.f32.mrf.mxu0
  %v253 = vadd.f32 0.0, %v252
  %v254 = vpop.f32.mrf.mxu0
  %255 = vdwg.mxu0
  %v257 = vsel %vm174, %v166, 0
  %v260 = vsel %vm174, %v171, 0
  %262 = vmatprep.subr.mxu0 0.0
  %263 = vmatpush1.msra.mxu0 0.0
  %264 = vmatprep.subr.mxu0 0.0
  %265 = vmatpush1.msra.mxu0 0.0
  %266 = vmatprep.subr.mxu0 0.0
  %267 = vmatpush1.msra.mxu0 0.0
  %268 = vmatprep.subr.mxu0 0.0
  %269 = vmatpush1.msra.mxu0 0.0
  %270 = vmatprep.subr.mxu0 0.0
  %271 = vmatpush1.msra.mxu0 0.0
  %272 = vmatprep.subr.mxu0 0.0
  %273 = vmatpush1.msra.mxu0 0.0
  %274 = vmatprep.subr.mxu0 0.0
  %275 = vmatpush1.msra.mxu0 0.0
  %276 = vmatprep.subr.mxu0 0.0
  %277 = vmatpush1.msra.mxu0 0.0
  %278 = vmatprep.subr.mxu0 0.0
  %279 = vmatpush1.msra.mxu0 0.0
  %280 = vmatprep.subr.mxu0 0.0
  %281 = vmatpush1.msra.mxu0 0.0
  %282 = vmatprep.subr.mxu0 0.0
  %283 = vmatpush1.msra.mxu0 0.0
  %284 = vmatprep.subr.mxu0 0.0
  %285 = vmatpush1.msra.mxu0 0.0
  %286 = vmatprep.subr.mxu0 0.0
  %287 = vmatpush1.msra.mxu0 0.0
  %288 = vmatprep.subr.mxu0 0.0
  %289 = vmatpush1.msra.mxu0 0.0
  %290 = vmatprep.subr.mxu0 0.0
  %291 = vmatpush1.msra.mxu0 0.0
  %292 = vmatprep.subr.mxu0 0.0
  %293 = vmatpush1.msra.mxu0 %v78
  %294 = vmatprep.subr.mxu0 0.0
  %295 = vmatpush2.msra.mxu0 0.0
  %296 = vmatprep.subr.mxu0 0.0
  %297 = vmatpush2.msra.mxu0 0.0
  %298 = vmatprep.subr.mxu0 0.0
  %299 = vmatpush2.msra.mxu0 0.0
  %300 = vmatprep.subr.mxu0 0.0
  %301 = vmatpush2.msra.mxu0 0.0
  %302 = vmatprep.subr.mxu0 0.0
  %303 = vmatpush2.msra.mxu0 0.0
  %304 = vmatprep.subr.mxu0 0.0
  %305 = vmatpush2.msra.mxu0 0.0
  %306 = vmatprep.subr.mxu0 0.0
  %307 = vmatpush2.msra.mxu0 0.0
  %308 = vmatprep.subr.mxu0 0.0
  %309 = vmatpush2.msra.mxu0 0.0
  %310 = vmatprep.subr.mxu0 0.0
  %311 = vmatpush2.msra.mxu0 0.0
  %312 = vmatprep.subr.mxu0 0.0
  %313 = vmatpush2.msra.mxu0 0.0
  %314 = vmatprep.subr.mxu0 0.0
  %315 = vmatpush2.msra.mxu0 0.0
  %316 = vmatprep.subr.mxu0 0.0
  %317 = vmatpush2.msra.mxu0 0.0
  %318 = vmatprep.subr.mxu0 0.0
  %319 = vmatpush2.msra.mxu0 0.0
  %320 = vmatprep.subr.mxu0 0.0
  %321 = vmatpush2.msra.mxu0 0.0
  %322 = vmatprep.subr.mxu0 0.0
  %323 = vmatpush2.msra.mxu0 0.0
  %324 = vmatprep.subr.mxu0 0.0
  %325 = vmatpush2.msra.mxu0 0.0
  %326 = vmatprep.mubr.f32.mxu0 0.0
  %327 = vmatmul.mubr.f32.gmra.mxu0 %v257
  %v328 = vpop.f32.mrf.mxu0
  %v329 = vadd.f32 %v248, %v328
  %v330 = vpop.f32.mrf.mxu0
  %331 = vmatprep.mubr.f32.mxu0 0.0
  %332 = vmatmul.mubr.f32.gmra.mxu0 %v260
  %v333 = vpop.f32.mrf.mxu0
  %v334 = vadd.f32 %v253, %v333
  %v335 = vpop.f32.mrf.mxu0
  %336 = vdwg.mxu0
  %v338 = vlaneseq
  %v339 = vshrl.u32 %v338, 7
  %v340 = vsub.s32 0, %v339
  %v341 = vrot.slane %v80, %v340
  %v343 = vadd.f32 %v329, %v341
  %v344 = vadd.f32 %v334, %v341
  %v345 = vmax.f32 %v343, 0.0
  %v346 = vmax.f32 %v344, 0.0
  %v347 = vld [vmem:[%s7] sm:$0xff]
  %v348 = vld [vmem:[%s7 + $0x8] sm:$0xff]
  %v349 = vld [vmem:[%s7 + $0x10] sm:$0xff]
  %v350 = vld [vmem:[%s7 + $0x18] sm:$0xff]
  %v351 = vld [vmem:[%s8] sm:$0xff]
  %v352 = vld [vmem:[%s8 + $0x8] sm:$0xff]
  %v353 = vld [vmem:[%s8 + $0x10] sm:$0xff]
  %v354 = vld [vmem:[%s8 + $0x18] sm:$0xff]
  %v355 = vld [vmem:[%s9] sm:$0x1]
  %v356 = vmul.f32 %v84, %v345
  %v357 = vmul.f32 %v89, %v346
  %358 = vmatprep.subr.mxu0 0.0
  %359 = vmatpush1.msra.mxu0 0.0
  %360 = vmatprep.subr.mxu0 0.0
  %361 = vmatpush1.msra.mxu0 0.0
  %362 = vmatprep.subr.mxu0 0.0
  %363 = vmatpush1.msra.mxu0 0.0
  %364 = vmatprep.subr.mxu0 0.0
  %365 = vmatpush1.msra.mxu0 0.0
  %366 = vmatprep.subr.mxu0 0.0
  %367 = vmatpush1.msra.mxu0 0.0
  %368 = vmatprep.subr.mxu0 0.0
  %369 = vmatpush1.msra.mxu0 0.0
  %370 = vmatprep.subr.mxu0 0.0
  %371 = vmatpush1.msra.mxu0 0.0
  %372 = vmatprep.subr.mxu0 0.0
  %373 = vmatpush1.msra.mxu0 0.0
  %374 = vmatprep.subr.mxu0 0.0
  %375 = vmatpush1.msra.mxu0 0.0
  %376 = vmatprep.subr.mxu0 0.0
  %377 = vmatpush1.msra.mxu0 0.0
  %378 = vmatprep.subr.mxu0 0.0
  %379 = vmatpush1.msra.mxu0 0.0
  %380 = vmatprep.subr.mxu0 0.0
  %381 = vmatpush1.msra.mxu0 0.0
  %382 = vmatprep.subr.mxu0 0.0
  %383 = vmatpush1.msra.mxu0 0.0
  %384 = vmatprep.subr.mxu0 0.0
  %385 = vmatpush1.msra.mxu0 0.0
  %386 = vmatprep.subr.mxu0 0.0
  %387 = vmatpush1.msra.mxu0 %v357
  %388 = vmatprep.subr.mxu0 0.0
  %389 = vmatpush1.msra.mxu0 %v356
  %390 = vmatprep.subr.mxu0 0.0
  %391 = vmatpush2.msra.mxu0 0.0
  %392 = vmatprep.subr.mxu0 0.0
  %393 = vmatpush2.msra.mxu0 0.0
  %394 = vmatprep.subr.mxu0 0.0
  %395 = vmatpush2.msra.mxu0 0.0
  %396 = vmatprep.subr.mxu0 0.0
  %397 = vmatpush2.msra.mxu0 0.0
  %398 = vmatprep.subr.mxu0 0.0
  %399 = vmatpush2.msra.mxu0 0.0
  %400 = vmatprep.subr.mxu0 0.0
  %401 = vmatpush2.msra.mxu0 0.0
  %402 = vmatprep.subr.mxu0 0.0
  %403 = vmatpush2.msra.mxu0 0.0
  %404 = vmatprep.subr.mxu0 0.0
  %405 = vmatpush2.msra.mxu0 0.0
  %406 = vmatprep.subr.mxu0 0.0
  %407 = vmatpush2.msra.mxu0 0.0
  %408 = vmatprep.subr.mxu0 0.0
  %409 = vmatpush2.msra.mxu0 0.0
  %410 = vmatprep.subr.mxu0 0.0
  %411 = vmatpush2.msra.mxu0 0.0
  %412 = vmatprep.subr.mxu0 0.0
  %413 = vmatpush2.msra.mxu0 0.0
  %414 = vmatprep.subr.mxu0 0.0
  %415 = vmatpush2.msra.mxu0 0.0
  %416 = vmatprep.subr.mxu0 0.0
  %417 = vmatpush2.msra.mxu0 0.0
  %418 = vmatprep.subr.mxu0 0.0
  %419 = vmatpush2.msra.mxu0 0.0
  %420 = vmatprep.subr.mxu0 0.0
  %421 = vmatpush2.msra.mxu0 0.0
  %422 = vmatprep.mubr.f32.mxu0 0.0
  %423 = vmatmul.mubr.f32.gmra.mxu0 %v94
  %v424 = vpop.f32.mrf.mxu0
  %v425 = vadd.f32 0.0, %v424
  %v426 = vpop.f32.mrf.mxu0
  %427 = vmatprep.mubr.f32.mxu0 0.0
  %428 = vmatmul.mubr.f32.gmra.mxu0 %v97
  %v429 = vpop.f32.mrf.mxu0
  %v430 = vadd.f32 0.0, %v429
  %v431 = vpop.f32.mrf.mxu0
  %432 = vdwg.mxu0
  %vm433 = vcmask 261120
  %v435 = vsel %vm433, %v345, 0
  %v438 = vsel %vm433, %v346, 0
  %440 = vmatprep.subr.mxu0 0.0
  %441 = vmatpush1.msra.mxu0 0.0
  %442 = vmatprep.subr.mxu0 0.0
  %443 = vmatpush1.msra.mxu0 0.0
  %444 = vmatprep.subr.mxu0 0.0
  %445 = vmatpush1.msra.mxu0 0.0
  %446 = vmatprep.subr.mxu0 0.0
  %447 = vmatpush1.msra.mxu0 0.0
  %448 = vmatprep.subr.mxu0 0.0
  %449 = vmatpush1.msra.mxu0 0.0
  %450 = vmatprep.subr.mxu0 0.0
  %451 = vmatpush1.msra.mxu0 0.0
  %452 = vmatprep.subr.mxu0 0.0
  %453 = vmatpush1.msra.mxu0 0.0
  %454 = vmatprep.subr.mxu0 0.0
  %455 = vmatpush1.msra.mxu0 0.0
  %456 = vmatprep.subr.mxu0 0.0
  %457 = vmatpush1.msra.mxu0 0.0
  %458 = vmatprep.subr.mxu0 0.0
  %459 = vmatpush1.msra.mxu0 0.0
  %460 = vmatprep.subr.mxu0 0.0
  %461 = vmatpush1.msra.mxu0 0.0
  %462 = vmatprep.subr.mxu0 0.0
  %463 = vmatpush1.msra.mxu0 0.0
  %464 = vmatprep.subr.mxu0 0.0
  %465 = vmatpush1.msra.mxu0 %v354
  %466 = vmatprep.subr.mxu0 0.0
  %467 = vmatpush1.msra.mxu0 %v353
  %468 = vmatprep.subr.mxu0 0.0
  %469 = vmatpush1.msra.mxu0 %v352
  %470 = vmatprep.subr.mxu0 0.0
  %471 = vmatpush1.msra.mxu0 %v351
  %472 = vmatprep.subr.mxu0 0.0
  %473 = vmatpush2.msra.mxu0 0.0
  %474 = vmatprep.subr.mxu0 0.0
  %475 = vmatpush2.msra.mxu0 0.0
  %476 = vmatprep.subr.mxu0 0.0
  %477 = vmatpush2.msra.mxu0 0.0
  %478 = vmatprep.subr.mxu0 0.0
  %479 = vmatpush2.msra.mxu0 0.0
  %480 = vmatprep.subr.mxu0 0.0
  %481 = vmatpush2.msra.mxu0 0.0
  %482 = vmatprep.subr.mxu0 0.0
  %483 = vmatpush2.msra.mxu0 0.0
  %484 = vmatprep.subr.mxu0 0.0
  %485 = vmatpush2.msra.mxu0 0.0
  %486 = vmatprep.subr.mxu0 0.0
  %487 = vmatpush2.msra.mxu0 0.0
  %488 = vmatprep.subr.mxu0 0.0
  %489 = vmatpush2.msra.mxu0 0.0
  %490 = vmatprep.subr.mxu0 0.0
  %491 = vmatpush2.msra.mxu0 0.0
  %492 = vmatprep.subr.mxu0 0.0
  %493 = vmatpush2.msra.mxu0 0.0
  %494 = vmatprep.subr.mxu0 0.0
  %495 = vmatpush2.msra.mxu0 0.0
  %496 = vmatprep.subr.mxu0 0.0
  %497 = vmatpush2.msra.mxu0 0.0
  %498 = vmatprep.subr.mxu0 0.0
  %499 = vmatpush2.msra.mxu0 0.0
  %500 = vmatprep.subr.mxu0 0.0
  %501 = vmatpush2.msra.mxu0 0.0
  %502 = vmatprep.subr.mxu0 0.0
  %503 = vmatpush2.msra.mxu0 0.0
  %504 = vmatprep.mubr.f32.mxu0 0.0
  %505 = vmatmul.mubr.f32.gmra.mxu0 %v435
  %v506 = vpop.f32.mrf.mxu0
  %v507 = vadd.f32 0.0, %v506
  %v508 = vpop.f32.mrf.mxu0
  %509 = vmatprep.mubr.f32.mxu0 0.0
  %510 = vmatmul.mubr.f32.gmra.mxu0 %v438
  %v511 = vpop.f32.mrf.mxu0
  %v512 = vadd.f32 0.0, %v511
  %v513 = vpop.f32.mrf.mxu0
  %514 = vdwg.mxu0
  %v516 = vsel %vm433, %v425, 0
  %v519 = vsel %vm433, %v430, 0
  %521 = vmatprep.subr.mxu0 0.0
  %522 = vmatpush1.msra.mxu0 0.0
  %523 = vmatprep.subr.mxu0 0.0
  %524 = vmatpush1.msra.mxu0 0.0
  %525 = vmatprep.subr.mxu0 0.0
  %526 = vmatpush1.msra.mxu0 0.0
  %527 = vmatprep.subr.mxu0 0.0
  %528 = vmatpush1.msra.mxu0 0.0
  %529 = vmatprep.subr.mxu0 0.0
  %530 = vmatpush1.msra.mxu0 0.0
  %531 = vmatprep.subr.mxu0 0.0
  %532 = vmatpush1.msra.mxu0 0.0
  %533 = vmatprep.subr.mxu0 0.0
  %534 = vmatpush1.msra.mxu0 0.0
  %535 = vmatprep.subr.mxu0 0.0
  %536 = vmatpush1.msra.mxu0 0.0
  %537 = vmatprep.subr.mxu0 0.0
  %538 = vmatpush1.msra.mxu0 0.0
  %539 = vmatprep.subr.mxu0 0.0
  %540 = vmatpush1.msra.mxu0 0.0
  %541 = vmatprep.subr.mxu0 0.0
  %542 = vmatpush1.msra.mxu0 0.0
  %543 = vmatprep.subr.mxu0 0.0
  %544 = vmatpush1.msra.mxu0 0.0
  %545 = vmatprep.subr.mxu0 0.0
  %546 = vmatpush1.msra.mxu0 %v350
  %547 = vmatprep.subr.mxu0 0.0
  %548 = vmatpush1.msra.mxu0 %v349
  %549 = vmatprep.subr.mxu0 0.0
  %550 = vmatpush1.msra.mxu0 %v348
  %551 = vmatprep.subr.mxu0 0.0
  %552 = vmatpush1.msra.mxu0 %v347
  %553 = vmatprep.subr.mxu0 0.0
  %554 = vmatpush2.msra.mxu0 0.0
  %555 = vmatprep.subr.mxu0 0.0
  %556 = vmatpush2.msra.mxu0 0.0
  %557 = vmatprep.subr.mxu0 0.0
  %558 = vmatpush2.msra.mxu0 0.0
  %559 = vmatprep.subr.mxu0 0.0
  %560 = vmatpush2.msra.mxu0 0.0
  %561 = vmatprep.subr.mxu0 0.0
  %562 = vmatpush2.msra.mxu0 0.0
  %563 = vmatprep.subr.mxu0 0.0
  %564 = vmatpush2.msra.mxu0 0.0
  %565 = vmatprep.subr.mxu0 0.0
  %566 = vmatpush2.msra.mxu0 0.0
  %567 = vmatprep.subr.mxu0 0.0
  %568 = vmatpush2.msra.mxu0 0.0
  %569 = vmatprep.subr.mxu0 0.0
  %570 = vmatpush2.msra.mxu0 0.0
  %571 = vmatprep.subr.mxu0 0.0
  %572 = vmatpush2.msra.mxu0 0.0
  %573 = vmatprep.subr.mxu0 0.0
  %574 = vmatpush2.msra.mxu0 0.0
  %575 = vmatprep.subr.mxu0 0.0
  %576 = vmatpush2.msra.mxu0 0.0
  %577 = vmatprep.subr.mxu0 0.0
  %578 = vmatpush2.msra.mxu0 0.0
  %579 = vmatprep.subr.mxu0 0.0
  %580 = vmatpush2.msra.mxu0 0.0
  %581 = vmatprep.subr.mxu0 0.0
  %582 = vmatpush2.msra.mxu0 0.0
  %583 = vmatprep.subr.mxu0 0.0
  %584 = vmatpush2.msra.mxu0 0.0
  %585 = vmatprep.mubr.f32.mxu0 0.0
  %586 = vmatmul.mubr.f32.gmra.mxu0 %v516
  %v587 = vpop.f32.mrf.mxu0
  %v588 = vadd.f32 %v507, %v587
  %v589 = vpop.f32.mrf.mxu0
  %590 = vmatprep.mubr.f32.mxu0 0.0
  %591 = vmatmul.mubr.f32.gmra.mxu0 %v519
  %v592 = vpop.f32.mrf.mxu0
  %v593 = vadd.f32 %v512, %v592
  %v594 = vpop.f32.mrf.mxu0
  %595 = vdwg.mxu0
  %v597 = vlaneseq
  %v598 = vshrl.u32 %v597, 7
  %v599 = vsub.s32 0, %v598
  %v600 = vrot.slane %v355, %v599
  %v602 = vadd.f32 %v588, %v600
  %v603 = vadd.f32 %v593, %v600
  %v604 = vmax.f32 %v602, 0.0
  %v605 = vmax.f32 %v603, 0.0
  %v606 = vld [vmem:[%s10] sm:$0xff]
  %v607 = vld [vmem:[%s10 + $0x8] sm:$0xff]
  %v608 = vld [vmem:[%s10 + $0x10] sm:$0xff]
  %v609 = vld [vmem:[%s10 + $0x18] sm:$0xff]
  %v610 = vld [vmem:[%s11] sm:$0xff]
  %v611 = vld [vmem:[%s11 + $0x8] sm:$0xff]
  %v612 = vld [vmem:[%s11 + $0x10] sm:$0xff]
  %v613 = vld [vmem:[%s11 + $0x18] sm:$0xff]
  %v614 = vld [vmem:[#allocation2] sm:$0x1]
  %v615 = vmul.f32 %v84, %v604
  %v616 = vmul.f32 %v89, %v605
  %617 = vmatprep.subr.mxu0 0.0
  %618 = vmatpush1.msra.mxu0 0.0
  %619 = vmatprep.subr.mxu0 0.0
  %620 = vmatpush1.msra.mxu0 0.0
  %621 = vmatprep.subr.mxu0 0.0
  %622 = vmatpush1.msra.mxu0 0.0
  %623 = vmatprep.subr.mxu0 0.0
  %624 = vmatpush1.msra.mxu0 0.0
  %625 = vmatprep.subr.mxu0 0.0
  %626 = vmatpush1.msra.mxu0 0.0
  %627 = vmatprep.subr.mxu0 0.0
  %628 = vmatpush1.msra.mxu0 0.0
  %629 = vmatprep.subr.mxu0 0.0
  %630 = vmatpush1.msra.mxu0 0.0
  %631 = vmatprep.subr.mxu0 0.0
  %632 = vmatpush1.msra.mxu0 0.0
  %633 = vmatprep.subr.mxu0 0.0
  %634 = vmatpush1.msra.mxu0 0.0
  %635 = vmatprep.subr.mxu0 0.0
  %636 = vmatpush1.msra.mxu0 0.0
  %637 = vmatprep.subr.mxu0 0.0
  %638 = vmatpush1.msra.mxu0 0.0
  %639 = vmatprep.subr.mxu0 0.0
  %640 = vmatpush1.msra.mxu0 0.0
  %641 = vmatprep.subr.mxu0 0.0
  %642 = vmatpush1.msra.mxu0 0.0
  %643 = vmatprep.subr.mxu0 0.0
  %644 = vmatpush1.msra.mxu0 0.0
  %645 = vmatprep.subr.mxu0 0.0
  %646 = vmatpush1.msra.mxu0 %v616
  %647 = vmatprep.subr.mxu0 0.0
  %648 = vmatpush1.msra.mxu0 %v615
  %649 = vmatprep.subr.mxu0 0.0
  %650 = vmatpush2.msra.mxu0 0.0
  %651 = vmatprep.subr.mxu0 0.0
  %652 = vmatpush2.msra.mxu0 0.0
  %653 = vmatprep.subr.mxu0 0.0
  %654 = vmatpush2.msra.mxu0 0.0
  %655 = vmatprep.subr.mxu0 0.0
  %656 = vmatpush2.msra.mxu0 0.0
  %657 = vmatprep.subr.mxu0 0.0
  %658 = vmatpush2.msra.mxu0 0.0
  %659 = vmatprep.subr.mxu0 0.0
  %660 = vmatpush2.msra.mxu0 0.0
  %661 = vmatprep.subr.mxu0 0.0
  %662 = vmatpush2.msra.mxu0 0.0
  %663 = vmatprep.subr.mxu0 0.0
  %664 = vmatpush2.msra.mxu0 0.0
  %665 = vmatprep.subr.mxu0 0.0
  %666 = vmatpush2.msra.mxu0 0.0
  %667 = vmatprep.subr.mxu0 0.0
  %668 = vmatpush2.msra.mxu0 0.0
  %669 = vmatprep.subr.mxu0 0.0
  %670 = vmatpush2.msra.mxu0 0.0
  %671 = vmatprep.subr.mxu0 0.0
  %672 = vmatpush2.msra.mxu0 0.0
  %673 = vmatprep.subr.mxu0 0.0
  %674 = vmatpush2.msra.mxu0 0.0
  %675 = vmatprep.subr.mxu0 0.0
  %676 = vmatpush2.msra.mxu0 0.0
  %677 = vmatprep.subr.mxu0 0.0
  %678 = vmatpush2.msra.mxu0 0.0
  %679 = vmatprep.subr.mxu0 0.0
  %680 = vmatpush2.msra.mxu0 0.0
  %681 = vmatprep.mubr.f32.mxu0 0.0
  %682 = vmatmul.mubr.f32.gmra.mxu0 %v94
  %v683 = vpop.f32.mrf.mxu0
  %v684 = vadd.f32 0.0, %v683
  %v685 = vpop.f32.mrf.mxu0
  %686 = vmatprep.mubr.f32.mxu0 0.0
  %687 = vmatmul.mubr.f32.gmra.mxu0 %v97
  %v688 = vpop.f32.mrf.mxu0
  %v689 = vadd.f32 0.0, %v688
  %v690 = vpop.f32.mrf.mxu0
  %691 = vdwg.mxu0
  %v693 = vsel %vm433, %v604, 0
  %v696 = vsel %vm433, %v605, 0
  %698 = vmatprep.subr.mxu0 0.0
  %699 = vmatpush1.msra.mxu0 0.0
  %700 = vmatprep.subr.mxu0 0.0
  %701 = vmatpush1.msra.mxu0 0.0
  %702 = vmatprep.subr.mxu0 0.0
  %703 = vmatpush1.msra.mxu0 0.0
  %704 = vmatprep.subr.mxu0 0.0
  %705 = vmatpush1.msra.mxu0 0.0
  %706 = vmatprep.subr.mxu0 0.0
  %707 = vmatpush1.msra.mxu0 0.0
  %708 = vmatprep.subr.mxu0 0.0
  %709 = vmatpush1.msra.mxu0 0.0
  %710 = vmatprep.subr.mxu0 0.0
  %711 = vmatpush1.msra.mxu0 0.0
  %712 = vmatprep.subr.mxu0 0.0
  %713 = vmatpush1.msra.mxu0 0.0
  %714 = vmatprep.subr.mxu0 0.0
  %715 = vmatpush1.msra.mxu0 0.0
  %716 = vmatprep.subr.mxu0 0.0
  %717 = vmatpush1.msra.mxu0 0.0
  %718 = vmatprep.subr.mxu0 0.0
  %719 = vmatpush1.msra.mxu0 0.0
  %720 = vmatprep.subr.mxu0 0.0
  %721 = vmatpush1.msra.mxu0 0.0
  %722 = vmatprep.subr.mxu0 0.0
  %723 = vmatpush1.msra.mxu0 %v613
  %724 = vmatprep.subr.mxu0 0.0
  %725 = vmatpush1.msra.mxu0 %v612
  %726 = vmatprep.subr.mxu0 0.0
  %727 = vmatpush1.msra.mxu0 %v611
  %728 = vmatprep.subr.mxu0 0.0
  %729 = vmatpush1.msra.mxu0 %v610
  %730 = vmatprep.subr.mxu0 0.0
  %731 = vmatpush2.msra.mxu0 0.0
  %732 = vmatprep.subr.mxu0 0.0
  %733 = vmatpush2.msra.mxu0 0.0
  %734 = vmatprep.subr.mxu0 0.0
  %735 = vmatpush2.msra.mxu0 0.0
  %736 = vmatprep.subr.mxu0 0.0
  %737 = vmatpush2.msra.mxu0 0.0
  %738 = vmatprep.subr.mxu0 0.0
  %739 = vmatpush2.msra.mxu0 0.0
  %740 = vmatprep.subr.mxu0 0.0
  %741 = vmatpush2.msra.mxu0 0.0
  %742 = vmatprep.subr.mxu0 0.0
  %743 = vmatpush2.msra.mxu0 0.0
  %744 = vmatprep.subr.mxu0 0.0
  %745 = vmatpush2.msra.mxu0 0.0
  %746 = vmatprep.subr.mxu0 0.0
  %747 = vmatpush2.msra.mxu0 0.0
  %748 = vmatprep.subr.mxu0 0.0
  %749 = vmatpush2.msra.mxu0 0.0
  %750 = vmatprep.subr.mxu0 0.0
  %751 = vmatpush2.msra.mxu0 0.0
  %752 = vmatprep.subr.mxu0 0.0
  %753 = vmatpush2.msra.mxu0 0.0
  %754 = vmatprep.subr.mxu0 0.0
  %755 = vmatpush2.msra.mxu0 0.0
  %756 = vmatprep.subr.mxu0 0.0
  %757 = vmatpush2.msra.mxu0 0.0
  %758 = vmatprep.subr.mxu0 0.0
  %759 = vmatpush2.msra.mxu0 0.0
  %760 = vmatprep.subr.mxu0 0.0
  %761 = vmatpush2.msra.mxu0 0.0
  %762 = vmatprep.mubr.f32.mxu0 0.0
  %763 = vmatmul.mubr.f32.gmra.mxu0 %v693
  %v764 = vpop.f32.mrf.mxu0
  %v765 = vadd.f32 0.0, %v764
  %v766 = vpop.f32.mrf.mxu0
  %767 = vmatprep.mubr.f32.mxu0 0.0
  %768 = vmatmul.mubr.f32.gmra.mxu0 %v696
  %v769 = vpop.f32.mrf.mxu0
  %v770 = vadd.f32 0.0, %v769
  %v771 = vpop.f32.mrf.mxu0
  %772 = vdwg.mxu0
  %v774 = vsel %vm433, %v684, 0
  %v777 = vsel %vm433, %v689, 0
  %779 = vmatprep.subr.mxu0 0.0
  %780 = vmatpush1.msra.mxu0 0.0
  %781 = vmatprep.subr.mxu0 0.0
  %782 = vmatpush1.msra.mxu0 0.0
  %783 = vmatprep.subr.mxu0 0.0
  %784 = vmatpush1.msra.mxu0 0.0
  %785 = vmatprep.subr.mxu0 0.0
  %786 = vmatpush1.msra.mxu0 0.0
  %787 = vmatprep.subr.mxu0 0.0
  %788 = vmatpush1.msra.mxu0 0.0
  %789 = vmatprep.subr.mxu0 0.0
  %790 = vmatpush1.msra.mxu0 0.0
  %791 = vmatprep.subr.mxu0 0.0
  %792 = vmatpush1.msra.mxu0 0.0
  %793 = vmatprep.subr.mxu0 0.0
  %794 = vmatpush1.msra.mxu0 0.0
  %795 = vmatprep.subr.mxu0 0.0
  %796 = vmatpush1.msra.mxu0 0.0
  %797 = vmatprep.subr.mxu0 0.0
  %798 = vmatpush1.msra.mxu0 0.0
  %799 = vmatprep.subr.mxu0 0.0
  %800 = vmatpush1.msra.mxu0 0.0
  %801 = vmatprep.subr.mxu0 0.0
  %802 = vmatpush1.msra.mxu0 0.0
  %803 = vmatprep.subr.mxu0 0.0
  %804 = vmatpush1.msra.mxu0 %v609
  %805 = vmatprep.subr.mxu0 0.0
  %806 = vmatpush1.msra.mxu0 %v608
  %807 = vmatprep.subr.mxu0 0.0
  %808 = vmatpush1.msra.mxu0 %v607
  %809 = vmatprep.subr.mxu0 0.0
  %810 = vmatpush1.msra.mxu0 %v606
  %811 = vmatprep.subr.mxu0 0.0
  %812 = vmatpush2.msra.mxu0 0.0
  %813 = vmatprep.subr.mxu0 0.0
  %814 = vmatpush2.msra.mxu0 0.0
  %815 = vmatprep.subr.mxu0 0.0
  %816 = vmatpush2.msra.mxu0 0.0
  %817 = vmatprep.subr.mxu0 0.0
  %818 = vmatpush2.msra.mxu0 0.0
  %819 = vmatprep.subr.mxu0 0.0
  %820 = vmatpush2.msra.mxu0 0.0
  %821 = vmatprep.subr.mxu0 0.0
  %822 = vmatpush2.msra.mxu0 0.0
  %823 = vmatprep.subr.mxu0 0.0
  %824 = vmatpush2.msra.mxu0 0.0
  %825 = vmatprep.subr.mxu0 0.0
  %826 = vmatpush2.msra.mxu0 0.0
  %827 = vmatprep.subr.mxu0 0.0
  %828 = vmatpush2.msra.mxu0 0.0
  %829 = vmatprep.subr.mxu0 0.0
  %830 = vmatpush2.msra.mxu0 0.0
  %831 = vmatprep.subr.mxu0 0.0
  %832 = vmatpush2.msra.mxu0 0.0
  %833 = vmatprep.subr.mxu0 0.0
  %834 = vmatpush2.msra.mxu0 0.0
  %835 = vmatprep.subr.mxu0 0.0
  %836 = vmatpush2.msra.mxu0 0.0
  %837 = vmatprep.subr.mxu0 0.0
  %838 = vmatpush2.msra.mxu0 0.0
  %839 = vmatprep.subr.mxu0 0.0
  %840 = vmatpush2.msra.mxu0 0.0
  %841 = vmatprep.subr.mxu0 0.0
  %842 = vmatpush2.msra.mxu0 0.0
  %843 = vmatprep.mubr.f32.mxu0 0.0
  %844 = vmatmul.mubr.f32.gmra.mxu0 %v774
  %v845 = vpop.f32.mrf.mxu0
  %v846 = vadd.f32 %v765, %v845
  %v847 = vpop.f32.mrf.mxu0
  %848 = vmatprep.mubr.f32.mxu0 0.0
  %849 = vmatmul.mubr.f32.gmra.mxu0 %v777
  %v850 = vpop.f32.mrf.mxu0
  %v851 = vadd.f32 %v770, %v850
  %v852 = vpop.f32.mrf.mxu0
  %853 = vdwg.mxu0
  %v855 = vlaneseq
  %v856 = vshrl.u32 %v855, 7
  %v857 = vsub.s32 0, %v856
  %v858 = vrot.slane %v614, %v857
  %v860 = vadd.f32 %v846, %v858
  %v861 = vadd.f32 %v851, %v858
  %vm862 = vcmask 7168
  %863 = vst.msk [vmem:[%s13] sm:$0xff] %vm862, %v860
  %864 = vst.msk [vmem:[%s13 + $0x8] sm:$0xff] %vm862, %v861
  // Predicated region
  $region54: #{tpu_custom_call.1} parent=0 // pred_check
    _
  $region55: #{tpu_custom_call.1} parent=0 // pred_check_branch
    %866 = sbr.rel (0) target = $region57
  $region56: #{tpu_custom_call.1} parent=0 // pred_region
    _
  $region57: #{tpu_custom_call.1} parent=0 // pred_fallthru
    _
  // Predicated region
  $region58: #{tpu_custom_call.1} parent=0 // pred_check
    _
  $region59: #{tpu_custom_call.1} parent=0 // pred_check_branch
    %868 = sbr.rel (0) target = $region61
  $region60: #{tpu_custom_call.1} parent=0 // pred_region
    _
  $region61: #{tpu_custom_call.1} parent=0 // pred_fallthru
    _

</llo_original>
